<compile_context>
chip_gen: v6e
topology: v6e:2x2x1
jax: 0.10.0
libtpu: 0.0.40
codegen_flags: <defaults>
</compile_context>

<pallas_src>
import math

import jax
import jax.numpy as jnp
from jax.experimental import pallas as pl
from jax.experimental.pallas import tpu as pltpu


def make_positional_encoding(d_model: int, max_len: int = 5000) -> jnp.ndarray:
    """Deterministic buffer setup, mirroring the PyTorch __init__."""
    position = jnp.arange(max_len, dtype=jnp.float32)[:, None]            # [max_len, 1]
    div_term = jnp.exp(
        jnp.arange(0, d_model, 2, dtype=jnp.float32) * (-math.log(10000.0) / d_model)
    )                                                                      # [d_model//2]
    pe = jnp.zeros((max_len, d_model), dtype=jnp.float32)
    pe = pe.at[:, 0::2].set(jnp.sin(position * div_term))
    pe = pe.at[:, 1::2].set(jnp.cos(position * div_term))
    return pe  # [max_len, d_model] (the "1" batch dim of the torch buffer squeezed)


def _pos_enc_kernel(x_ref, pe_ref, o_ref):
    # x_ref : (ts, C)  -- one chunk of sequence positions, lane-dense
    # pe_ref: (1,  C)  -- flattened pe[:B, :] (resident across all grid steps)
    o_ref[...] = (x_ref[...] + pe_ref[...]).astype(o_ref.dtype)


def _vmem_capacity_bytes() -> int:
    try:
        return int(pltpu.get_tpu_info().vmem_capacity_bytes)
    except Exception:
        return 64 << 20  # conservative fallback (v7x per-TC VMEM)


def _choose_tile(seq_len: int, lanes: int, itemsize: int, target_bytes: int) -> int:
    """Largest seq-chunk (multiple of 8) with a ~target_bytes tile; no row cap."""
    ts = target_bytes // max(1, lanes * itemsize)
    ts = (ts // 8) * 8
    ts = max(8, ts)
    if ts >= seq_len:
        return seq_len  # full dim -> always a legal block shape
    return ts


# Below this many bytes of x, skip pallas_call entirely (launch cost > work).
_PALLAS_MIN_BYTES = 256 << 10


def positional_encoding_forward(x: jnp.ndarray, pe: jnp.ndarray, *,
                                min_pallas_bytes: int = _PALLAS_MIN_BYTES) -> jnp.ndarray:
    """x: [seq_len, batch, d_model] -> same shape."""
    S, B, D = x.shape
    assert B <= pe.shape[0], "batch size must be <= max_len (PyTorch pe[:batch] slice)"

    C = B * D
    itemsize = jnp.dtype(x.dtype).itemsize

    # Lane-dense 2-D slab. Reshape is free (row-major contiguous).
    x2 = x.reshape(S, C)
    # NOTE: pre-casting pe to x.dtype means bf16 inputs stay bf16 (the PyTorch
    # reference would promote to f32); intentional to keep the kernel dtype-clean.
    pe_b = pe[:B, :].astype(x.dtype).reshape(1, C)

    # Tiny-input bypass: a fused XLA add beats any kernel launch at these sizes.
    if S * C * itemsize < min_pallas_bytes:
        return (x2 + pe_b).reshape(S, B, D)

    vmem_cap = _vmem_capacity_bytes()
    # ~8 MiB tiles on 64 MiB-VMEM chips, ~16 MiB on 128 MiB chips.
    target_tile_bytes = int(min(16 << 20, max(4 << 20, vmem_cap // 8)))
    ts = _choose_tile(S, C, itemsize, target_tile_bytes)
    grid = (pl.cdiv(S, ts),)

    # 2x in + 2x out double-buffered tiles plus pe stay well under this.
    vmem_limit = int(min(vmem_cap * 3 // 4, 96 << 20))

    out2 = pl.pallas_call(
        _pos_enc_kernel,
        out_shape=jax.ShapeDtypeStruct((S, C), x.dtype),
        grid=grid,
        in_specs=[
            pl.BlockSpec((ts, C), lambda s: (s, 0)),      # full-extent last dim, no pad
            pl.BlockSpec((1, C), lambda s: (0, 0)),       # pe resident across steps
        ],
        out_specs=pl.BlockSpec((ts, C), lambda s: (s, 0)),
        input_output_aliases={0: 0},                      # write back into x2's buffer
        compiler_params=pltpu.CompilerParams(
            dimension_semantics=("parallel",),
            vmem_limit_bytes=vmem_limit,
        ),
        cost_estimate=pl.CostEstimate(
            flops=S * C,
            transcendentals=0,
            bytes_accessed=2 * S * C * itemsize + C * itemsize,
        ),
    )(x2, pe_b)

    return out2.reshape(S, B, D)


if __name__ == "__main__":
    def reference(x, pe):
        # Pure-JAX reference replicating the PyTorch forward exactly.
        x_t = jnp.transpose(x, (1, 0, 2))                 # [B, S, D]
        r = x_t + pe[: x_t.shape[0], None, :]             # pe[:B] broadcast over seq
        return jnp.transpose(r, (1, 0, 2))                # [S, B, D]

    key = jax.random.PRNGKey(0)
    k1, k2 = jax.random.split(key)

    # Case 1: module-sized small shape, forced through the Pallas kernel.
    seq_len, batch, d_model, max_len = 8, 2, 32, 64
    x = jax.random.normal(k1, (seq_len, batch, d_model), dtype=jnp.float32)
    pe = make_positional_encoding(d_model, max_len)
    ref = reference(x, pe)
    out = jax.block_until_ready(positional_encoding_forward(x, pe, min_pallas_bytes=0))
    assert out.shape == x.shape and out.dtype == x.dtype
    assert jnp.allclose(out, ref, atol=1e-6, rtol=1e-6)

    # Case 2: lane-unaligned C = B*D (not a multiple of 128) -> masked tail-store
    # path, still through the Pallas kernel.
    seq_len2, batch2, d_model2 = 640, 2, 48
    x_b = jax.random.normal(k2, (seq_len2, batch2, d_model2), dtype=jnp.float32)
    pe_b = make_positional_encoding(d_model2, max_len)
    ref_b = reference(x_b, pe_b)
    out_b = jax.block_until_ready(
        positional_encoding_forward(x_b, pe_b, min_pallas_bytes=0))
    assert out_b.shape == x_b.shape and out_b.dtype == x_b.dtype
    assert jnp.allclose(out_b, ref_b, atol=1e-6, rtol=1e-6)

    # Case 3: default wrapper at tiny shape takes the fused-XLA bypass.
    out_c = jax.block_until_ready(positional_encoding_forward(x, pe))
    assert jnp.allclose(out_c, ref, atol=1e-6, rtol=1e-6)

    print("KERNEL_OK")
</pallas_src>

<mosaic_0001>
module attributes {stable_mosaic.version = 11 : i64} {
  func.func @_pos_enc_kernel(%arg0: i32, %arg1: memref<8x64xf32, #tpu.memory_space<vmem>>, %arg2: memref<1x64xf32, #tpu.memory_space<vmem>>, %arg3: memref<8x64xf32, #tpu.memory_space<vmem>>) attributes {dimension_semantics = [#tpu.dimension_semantics<parallel>], iteration_bounds = array<i64: 1>, scalar_prefetch = 0 : i64, scratch_operands = 0 : i64, tpu.core_type = #tpu.core_type<tc>, window_params = [{transform_indices = @transform_0, window_bounds = array<i64: 8, 64>}, {pipeline_mode = #tpu.pipeline_mode<synchronous>, transform_indices = @transform_1, window_bounds = array<i64: 1, 64>}, {transform_indices = @transform_2, window_bounds = array<i64: 8, 64>}]} {
    %c0 = arith.constant 0 : index
    %c0_0 = arith.constant 0 : index
    %0 = vector.load %arg1[%c0, %c0_0] : memref<8x64xf32, #tpu.memory_space<vmem>>, vector<8x64xf32>
    %c0_1 = arith.constant 0 : index
    %c0_2 = arith.constant 0 : index
    %1 = vector.load %arg2[%c0_1, %c0_2] : memref<1x64xf32, #tpu.memory_space<vmem>>, vector<1x64xf32>
    %2 = vector.broadcast %1 : vector<1x64xf32> to vector<8x64xf32>
    %3 = arith.addf %0, %2 : vector<8x64xf32>
    %c0_3 = arith.constant 0 : index
    %c0_4 = arith.constant 0 : index
    %4 = vector.load %arg3[%c0_3, %c0_4] : memref<8x64xf32, #tpu.memory_space<vmem>>, vector<8x64xf32>
    tpu.vector_store %arg3[%c0_3, %c0_4], %3 {strides = array<i32>} : memref<8x64xf32, #tpu.memory_space<vmem>>, vector<8x64xf32>,
    return
  }
  func.func @transform_0(%arg0: i32) -> (i32, i32) {
    %c0_i32 = arith.constant 0 : i32
    %c0_i32_0 = arith.constant 0 : i32
    return %arg0, %c0_i32 : i32, i32
  }
  func.func @transform_1(%arg0: i32) -> (i32, i32) {
    %c0_i32 = arith.constant 0 : i32
    %c0_i32_0 = arith.constant 0 : i32
    %c0_i32_1 = arith.constant 0 : i32
    return %c0_i32, %c0_i32_0 : i32, i32
  }
  func.func @transform_2(%arg0: i32) -> (i32, i32) {
    %c0_i32 = arith.constant 0 : i32
    %c0_i32_0 = arith.constant 0 : i32
    return %arg0, %c0_i32 : i32, i32
  }
}

</mosaic_0001>

<llo_original>
// kernel: tpu_custom_call.1
$region0: #{tpu_custom_call.1}
  #allocation0 [shape = 'u32[]', space=smem, size = 0x4, offset = 0x4, fixed_abs, tag = 'smem constant byte address 0x4 - core index']
  #allocation1 [shape = 'u32[144,128]{1,0:T(1,128)}', space=vmem, size = 0x12000, scoped, tag = 'internal scratch']
  %s0 = inlined_call_operand.hbm [shape: f32[8,64], index: 0, kind: input, shape index: {}, may-alias: {0,2}]
  %s1 = inlined_call_operand.vmem [shape: f32[1,64], index: 1, kind: input, shape index: {}]
  %s2 = inlined_call_operand.hbm [shape: f32[8,64], index: 2, kind: output, shape index: {}, may-alias: {0,2}]
  %s3 = sld [smem:[#allocation0]]
  $region22: #{tpu_custom_call.1} parent=0
    _
  %s5 = ssub.s32 1, %s3
  %s6 = scalar_select 0, %s5, %s3
  $region1: #{tpu_custom_call.1} parent=0
    #allocation2 [shape = 'u8[4096]{0}', space=vmem, size = 0x1000, scoped, tag = 'input window, operand 0, single buffered']
    #allocation3 [shape = 's32[1]{0}', space=sflag, size = 0x4, scoped, tag = 'scoped memory for tpu_custom_call.1']
    #allocation4 [shape = 's32[1]{0}', space=sflag, size = 0x4, scoped, tag = 'scoped memory for tpu_custom_call.1']
    #allocation5 [shape = 'u8[4096]{0}', space=vmem, size = 0x1000, scoped, tag = 'output window, operand 0, single buffered']
    %7 = vsyncpa [#allocation3], 0
    %8 = vsyncpa [#allocation4], 0
    // Predicated region
    $region2: #{tpu_custom_call.1} parent=1 // pred_check
      _
    $region3: #{tpu_custom_call.1} parent=1 // pred_check_branch
      %10 = sbr.rel (0) target = $region5
    $region4: #{tpu_custom_call.1} parent=1 // pred_region
      %s12 = ssub.s32 128, 128
      %13 = vsyncadd [#allocation3], %s12
      %s15 = sshll.u32 [#allocation2], 4
      %s16 = int_to_ptr.vmem [resolvable:$true] %s15
      %18 = dma.hbm_to_vmem [thread:$0]  %s0, 128, %s16, [#allocation3]
    $region5: #{tpu_custom_call.1} parent=1 // pred_fallthru
      _
    // Predicated region
    $region6: #{tpu_custom_call.1} parent=1 // pred_check
      _
    $region7: #{tpu_custom_call.1} parent=1 // pred_check_branch
      %20 = sbr.rel (0) target = $region9
    $region8: #{tpu_custom_call.1} parent=1 // pred_region
      _
    $region9: #{tpu_custom_call.1} parent=1 // pred_fallthru
      _
    // Predicated region
    $region10: #{tpu_custom_call.1} parent=1 // pred_check
      _
    $region11: #{tpu_custom_call.1} parent=1 // pred_check_branch
      %22 = sbr.rel (0) target = $region13
    $region12: #{tpu_custom_call.1} parent=1 // pred_region
      %23 = dma.done [#allocation3], 128
    $region13: #{tpu_custom_call.1} parent=1 // pred_fallthru
      _
    %v24 = vld [vmem:[#allocation2] sm:$0xff]
    %v25 = vld [vmem:[%s1] sm:$0x1]
    %v27 = vlaneseq
    %v28 = vshrl.u32 %v27, 7
    %v29 = vsub.s32 0, %v28
    %v30 = vrot.slane %v25, %v29
    %v32 = vadd.f32 %v24, %v30
    %vm33 = vcmask 523264
    %34 = vst.msk [vmem:[#allocation5] sm:$0xff] %vm33, %v32
    // Predicated region
    $region14: #{tpu_custom_call.1} parent=1 // pred_check
      _
    $region15: #{tpu_custom_call.1} parent=1 // pred_check_branch
      %36 = sbr.rel (0) target = $region17
    $region16: #{tpu_custom_call.1} parent=1 // pred_region
      %s38 = ssub.s32 128, 128
      %39 = vsyncadd [#allocation4], %s38
      %s41 = sshll.u32 [#allocation5], 4
      %s42 = int_to_ptr.vmem [resolvable:$true] %s41
      %44 = dma.vmem_to_hbm [thread:$0]  %s42, 128, %s2, [#allocation4]
    $region17: #{tpu_custom_call.1} parent=1 // pred_fallthru
      _
    // Predicated region
    $region18: #{tpu_custom_call.1} parent=1 // pred_check
      _
    $region19: #{tpu_custom_call.1} parent=1 // pred_check_branch
      %46 = sbr.rel (0) target = $region21
    $region20: #{tpu_custom_call.1} parent=1 // pred_region
      %47 = dma.done [#allocation4], 128
    $region21: #{tpu_custom_call.1} parent=1 // pred_fallthru
      _
    %48 = vsyncpa [#allocation3], 1
    %49 = vsyncpa [#allocation4], 1

</llo_original>
